<compile_context>
chip_gen: v7x
topology: tpu7x:2x2x1
jax: 0.10.0
libtpu: 0.0.40
codegen_flags: <defaults>
</compile_context>

<pallas_src>
import math

import jax
import jax.numpy as jnp
from jax.experimental import pallas as pl
from jax.experimental.pallas import tpu as pltpu


def _lstm_fused_kernel(x_ref, wih_ref, bias_ref, whh_ref, wout_ref, bout_ref,
                       pred_ref, hn_ref, cn_ref):
    """Whole MyLSTM forward in one kernel invocation.

    x_ref    : (T*B, D)   flattened input sequence
    wih_ref  : (D, 4H)    W_ih^T (gate-major columns i,f,g,o)
    bias_ref : (1, 4H)    b_ih + b_hh
    whh_ref  : (H, 4H)    W_hh^T (gate-major columns i,f,g,o)
    wout_ref : (H, 128)   W_out^T lane-padded with zeros
    bout_ref : (1, 128)   b_out lane-padded with -1e30 (softmax ignores pad lanes)
    pred_ref : (B, 2)     softmax prediction
    hn_ref   : (B, H)     final hidden state
    cn_ref   : (B, H)     final cell state
    """
    TB, _ = x_ref.shape
    B, H = hn_ref.shape
    T = TB // B
    G = 4 * H

    # ---- Prologue (off the serial chain): all-timesteps input projection, one matmul.
    xg_all = jnp.dot(x_ref[...], wih_ref[...], preferred_element_type=jnp.float32)
    xg_all = xg_all + bias_ref[...]                                   # (T*B, 4H)

    w_hh = whh_ref[...]                                               # (H, 4H), loaded once

    # Lane mask selecting the g-gate (tanh) lanes; hoisted out of the loop.
    lane = jax.lax.broadcasted_iota(jnp.int32, (B, G), 1)
    g_mask = (lane >= 2 * H) & (lane < 3 * H)

    h = jnp.zeros((B, H), jnp.float32)
    c = jnp.zeros((B, H), jnp.float32)

    # ---- Serial recurrence, fully unrolled. Per step: 1 MXU matmul, 2 full-vreg EUP
    #      passes (sigmoid/tanh) + 1 tanh(c), lane select/slices for gate extraction.
    for t in range(T):
        xg_t = xg_all[t * B:(t + 1) * B, :]                           # static sublane slice
        gates = xg_t + jnp.dot(h, w_hh, preferred_element_type=jnp.float32)  # (B, 4H)
        sig_all = jax.nn.sigmoid(gates)
        tanh_all = jnp.tanh(gates)
        acts = jnp.where(g_mask, tanh_all, sig_all)
        i_g = acts[:, 0 * H:1 * H]
        f_g = acts[:, 1 * H:2 * H]
        g_g = acts[:, 2 * H:3 * H]
        o_g = acts[:, 3 * H:4 * H]
        c = f_g * c + i_g * g_g
        h = o_g * jnp.tanh(c)

    # ---- Epilogue: Linear(H,2) + softmax, computed lane-padded to 128 so every op
    #      except the final (B,2) store is full-vreg-wide. Pad logits are -1e30 -> exp=0.
    logits_pad = jnp.dot(h, wout_ref[...], preferred_element_type=jnp.float32) + bout_ref[...]
    m = jnp.max(logits_pad, axis=1, keepdims=True)
    e = jnp.exp(logits_pad - m)
    denom = jnp.sum(e, axis=1, keepdims=True)
    pred_pad = e / denom

    pred_ref[...] = pred_pad[:, :pred_ref.shape[1]]
    hn_ref[...] = h
    cn_ref[...] = c


def my_lstm_forward(x, w_ih, w_hh, b_ih, b_hh, w_out, b_out):
    """x: (T, B, D) float32. Returns (prediction (B,2), (h_n (1,B,H), c_n (1,B,H)))."""
    T, B, D = x.shape
    H = w_hh.shape[1]
    n_out = w_out.shape[0]

    # Plain-JAX layout plumbing (free / trivial ops): transposes + flatten + lane padding.
    x_flat = x.reshape(T * B, D).astype(jnp.float32)                  # (T*B, D)
    w_ih_t = w_ih.T.astype(jnp.float32)                               # (D, 4H)
    bias = (b_ih + b_hh).astype(jnp.float32)[None, :]                 # (1, 4H)
    w_hh_t = w_hh.T.astype(jnp.float32)                               # (H, 4H)

    # Lane-pad the tiny output head to 128 lanes; padded bias lanes are -1e30 so the
    # in-kernel softmax over 128 lanes equals softmax over the 2 real lanes exactly.
    w_out_pad = jnp.zeros((H, 128), jnp.float32).at[:, :n_out].set(w_out.T.astype(jnp.float32))
    b_out_pad = jnp.full((1, 128), -1e30, jnp.float32).at[0, :n_out].set(b_out.astype(jnp.float32))

    pred, h_n, c_n = pl.pallas_call(
        _lstm_fused_kernel,
        out_shape=(
            jax.ShapeDtypeStruct((B, n_out), jnp.float32),
            jax.ShapeDtypeStruct((B, H), jnp.float32),
            jax.ShapeDtypeStruct((B, H), jnp.float32),
        ),
        in_specs=[pl.BlockSpec(memory_space=pltpu.MemorySpace.VMEM)] * 6,
        out_specs=(
            pl.BlockSpec(memory_space=pltpu.MemorySpace.VMEM),
            pl.BlockSpec(memory_space=pltpu.MemorySpace.VMEM),
            pl.BlockSpec(memory_space=pltpu.MemorySpace.VMEM),
        ),
    )(x_flat, w_ih_t, bias, w_hh_t, w_out_pad, b_out_pad)

    return pred, (h_n[None, :, :], c_n[None, :, :])


def _reference_forward(x, w_ih, w_hh, b_ih, b_hh, w_out, b_out):
    """Pure-JAX reference matching PyTorch nn.LSTM + Linear + Softmax."""
    T, B, D = x.shape
    H = w_hh.shape[1]

    def step(carry, x_t):
        h, c = carry
        gates = x_t @ w_ih.T + b_ih + h @ w_hh.T + b_hh
        i = jax.nn.sigmoid(gates[:, 0 * H:1 * H])
        f = jax.nn.sigmoid(gates[:, 1 * H:2 * H])
        g = jnp.tanh(gates[:, 2 * H:3 * H])
        o = jax.nn.sigmoid(gates[:, 3 * H:4 * H])
        c_new = f * c + i * g
        h_new = o * jnp.tanh(c_new)
        return (h_new, c_new), h_new

    h0 = jnp.zeros((B, H), jnp.float32)
    c0 = jnp.zeros((B, H), jnp.float32)
    (h_n, c_n), outputs = jax.lax.scan(step, (h0, c0), x)
    logits = outputs[-1] @ w_out.T + b_out
    pred = jax.nn.softmax(logits, axis=1)
    return pred, (h_n[None], c_n[None])


if __name__ == "__main__":
    # Small shapes consistent with the module: seq=8, batch=2, input_dim=4, hidden=32.
    T, B, D, H = 8, 2, 4, 32

    key = jax.random.PRNGKey(0)
    ks = jax.random.split(key, 8)
    bound = 1.0 / math.sqrt(H)

    # PyTorch-style uniform(-1/sqrt(H), 1/sqrt(H)) init for all LSTM params.
    w_ih = jax.random.uniform(ks[0], (4 * H, D), jnp.float32, -bound, bound)
    w_hh = jax.random.uniform(ks[1], (4 * H, H), jnp.float32, -bound, bound)
    b_ih = jax.random.uniform(ks[2], (4 * H,), jnp.float32, -bound, bound)
    b_hh = jax.random.uniform(ks[3], (4 * H,), jnp.float32, -bound, bound)
    w_out = jax.random.uniform(ks[4], (2, H), jnp.float32, -bound, bound)
    b_out = jax.random.uniform(ks[5], (2,), jnp.float32, -bound, bound)

    x = jax.random.normal(ks[6], (T, B, D), jnp.float32)

    pred, (h_n, c_n) = jax.jit(my_lstm_forward)(x, w_ih, w_hh, b_ih, b_hh, w_out, b_out)
    jax.block_until_ready((pred, h_n, c_n))

    # Correctness check against pure-JAX reference.
    pred_ref, (h_ref, c_ref) = _reference_forward(x, w_ih, w_hh, b_ih, b_hh, w_out, b_out)
    assert pred.shape == (B, 2) and h_n.shape == (1, B, H) and c_n.shape == (1, B, H)
    assert jnp.allclose(pred, pred_ref, atol=1e-5), "prediction mismatch"
    assert jnp.allclose(h_n, h_ref, atol=1e-5), "h_n mismatch"
    assert jnp.allclose(c_n, c_ref, atol=1e-5), "c_n mismatch"

    print("KERNEL_OK")
</pallas_src>

<mosaic_0001>
module attributes {stable_mosaic.version = 11 : i64} {
  func.func @_lstm_fused_kernel(%arg0: memref<16x4xf32, #tpu.memory_space<vmem>>, %arg1: memref<4x128xf32, #tpu.memory_space<vmem>>, %arg2: memref<1x128xf32, #tpu.memory_space<vmem>>, %arg3: memref<32x128xf32, #tpu.memory_space<vmem>>, %arg4: memref<32x128xf32, #tpu.memory_space<vmem>>, %arg5: memref<1x128xf32, #tpu.memory_space<vmem>>, %arg6: memref<2x2xf32, #tpu.memory_space<vmem>>, %arg7: memref<2x32xf32, #tpu.memory_space<vmem>>, %arg8: memref<2x32xf32, #tpu.memory_space<vmem>>) attributes {dimension_semantics = [], scalar_prefetch = 0 : i64, scratch_operands = 0 : i64, tpu.core_type = #tpu.core_type<tc>} {
    %c0 = arith.constant 0 : index
    %c0_0 = arith.constant 0 : index
    %0 = vector.load %arg0[%c0, %c0_0] : memref<16x4xf32, #tpu.memory_space<vmem>>, vector<16x4xf32>
    %c0_1 = arith.constant 0 : index
    %c0_2 = arith.constant 0 : index
    %1 = vector.load %arg1[%c0_1, %c0_2] : memref<4x128xf32, #tpu.memory_space<vmem>>, vector<4x128xf32>
    %cst = arith.constant dense<0.000000e+00> : vector<16x128xf32>
    %2 = tpu.matmul %0, %1, %cst {dimension_numbers = #tpu.dot_dimension_numbers<[1], [0], [0], [1], [0, 0, 1, 1], [], []>} : vector<16x4xf32>, vector<4x128xf32>, vector<16x128xf32> -> vector<16x128xf32>
    %c0_3 = arith.constant 0 : index
    %c0_4 = arith.constant 0 : index
    %3 = vector.load %arg2[%c0_3, %c0_4] : memref<1x128xf32, #tpu.memory_space<vmem>>, vector<1x128xf32>
    %4 = vector.broadcast %3 : vector<1x128xf32> to vector<16x128xf32>
    %5 = arith.addf %2, %4 : vector<16x128xf32>
    %c0_5 = arith.constant 0 : index
    %c0_6 = arith.constant 0 : index
    %6 = vector.load %arg3[%c0_5, %c0_6] : memref<32x128xf32, #tpu.memory_space<vmem>>, vector<32x128xf32>
    %7 = tpu.iota {dimensions = array<i32: 1>} : vector<2x128xi32>
    %c64_i32 = arith.constant 64 : i32
    %8 = vector.broadcast %c64_i32 : i32 to vector<2x128xi32>
    %9 = arith.cmpi sge, %7, %8 : vector<2x128xi32>
    %c96_i32 = arith.constant 96 : i32
    %10 = vector.broadcast %c96_i32 : i32 to vector<2x128xi32>
    %11 = arith.cmpi slt, %7, %10 : vector<2x128xi32>
    %12 = arith.andi %9, %11 : vector<2x128xi1>
    %cst_7 = arith.constant 0.000000e+00 : f32
    %13 = vector.broadcast %cst_7 : f32 to vector<2x32xf32>
    %cst_8 = arith.constant 0.000000e+00 : f32
    %14 = vector.broadcast %cst_8 : f32 to vector<2x32xf32>
    %15 = vector.extract_strided_slice %5 {offsets = [0, 0], sizes = [2, 128], strides = [1, 1]} : vector<16x128xf32> to vector<2x128xf32>
    %cst_9 = arith.constant dense<0.000000e+00> : vector<2x128xf32>
    %16 = tpu.matmul %13, %6, %cst_9 {dimension_numbers = #tpu.dot_dimension_numbers<[1], [0], [0], [1], [0, 0, 1, 1], [], []>} : vector<2x32xf32>, vector<32x128xf32>, vector<2x128xf32> -> vector<2x128xf32>
    %17 = arith.addf %15, %16 : vector<2x128xf32>
    %18 = arith.negf %17 : vector<2x128xf32>
    %19 = math.exp %18 : vector<2x128xf32>
    %cst_10 = arith.constant 1.000000e+00 : f32
    %20 = vector.broadcast %cst_10 : f32 to vector<2x128xf32>
    %21 = arith.addf %20, %19 : vector<2x128xf32>
    %22 = arith.divf %20, %21 : vector<2x128xf32>
    %23 = math.tanh %17 : vector<2x128xf32>
    %24 = arith.select %12, %23, %22 : vector<2x128xi1>, vector<2x128xf32>
    %25 = vector.extract_strided_slice %24 {offsets = [0, 0], sizes = [2, 32], strides = [1, 1]} : vector<2x128xf32> to vector<2x32xf32>
    %26 = vector.extract_strided_slice %24 {offsets = [0, 32], sizes = [2, 32], strides = [1, 1]} : vector<2x128xf32> to vector<2x32xf32>
    %27 = vector.extract_strided_slice %24 {offsets = [0, 64], sizes = [2, 32], strides = [1, 1]} : vector<2x128xf32> to vector<2x32xf32>
    %28 = vector.extract_strided_slice %24 {offsets = [0, 96], sizes = [2, 32], strides = [1, 1]} : vector<2x128xf32> to vector<2x32xf32>
    %29 = arith.mulf %26, %14 : vector<2x32xf32>
    %30 = arith.mulf %25, %27 : vector<2x32xf32>
    %31 = arith.addf %29, %30 : vector<2x32xf32>
    %32 = math.tanh %31 : vector<2x32xf32>
    %33 = arith.mulf %28, %32 : vector<2x32xf32>
    %34 = vector.extract_strided_slice %5 {offsets = [2, 0], sizes = [2, 128], strides = [1, 1]} : vector<16x128xf32> to vector<2x128xf32>
    %cst_11 = arith.constant dense<0.000000e+00> : vector<2x128xf32>
    %35 = tpu.matmul %33, %6, %cst_11 {dimension_numbers = #tpu.dot_dimension_numbers<[1], [0], [0], [1], [0, 0, 1, 1], [], []>} : vector<2x32xf32>, vector<32x128xf32>, vector<2x128xf32> -> vector<2x128xf32>
    %36 = arith.addf %34, %35 : vector<2x128xf32>
    %37 = arith.negf %36 : vector<2x128xf32>
    %38 = math.exp %37 : vector<2x128xf32>
    %cst_12 = arith.constant 1.000000e+00 : f32
    %39 = vector.broadcast %cst_12 : f32 to vector<2x128xf32>
    %40 = arith.addf %39, %38 : vector<2x128xf32>
    %41 = arith.divf %39, %40 : vector<2x128xf32>
    %42 = math.tanh %36 : vector<2x128xf32>
    %43 = arith.select %12, %42, %41 : vector<2x128xi1>, vector<2x128xf32>
    %44 = vector.extract_strided_slice %43 {offsets = [0, 0], sizes = [2, 32], strides = [1, 1]} : vector<2x128xf32> to vector<2x32xf32>
    %45 = vector.extract_strided_slice %43 {offsets = [0, 32], sizes = [2, 32], strides = [1, 1]} : vector<2x128xf32> to vector<2x32xf32>
    %46 = vector.extract_strided_slice %43 {offsets = [0, 64], sizes = [2, 32], strides = [1, 1]} : vector<2x128xf32> to vector<2x32xf32>
    %47 = vector.extract_strided_slice %43 {offsets = [0, 96], sizes = [2, 32], strides = [1, 1]} : vector<2x128xf32> to vector<2x32xf32>
    %48 = arith.mulf %45, %31 : vector<2x32xf32>
    %49 = arith.mulf %44, %46 : vector<2x32xf32>
    %50 = arith.addf %48, %49 : vector<2x32xf32>
    %51 = math.tanh %50 : vector<2x32xf32>
    %52 = arith.mulf %47, %51 : vector<2x32xf32>
    %53 = vector.extract_strided_slice %5 {offsets = [4, 0], sizes = [2, 128], strides = [1, 1]} : vector<16x128xf32> to vector<2x128xf32>
    %cst_13 = arith.constant dense<0.000000e+00> : vector<2x128xf32>
    %54 = tpu.matmul %52, %6, %cst_13 {dimension_numbers = #tpu.dot_dimension_numbers<[1], [0], [0], [1], [0, 0, 1, 1], [], []>} : vector<2x32xf32>, vector<32x128xf32>, vector<2x128xf32> -> vector<2x128xf32>
    %55 = arith.addf %53, %54 : vector<2x128xf32>
    %56 = arith.negf %55 : vector<2x128xf32>
    %57 = math.exp %56 : vector<2x128xf32>
    %cst_14 = arith.constant 1.000000e+00 : f32
    %58 = vector.broadcast %cst_14 : f32 to vector<2x128xf32>
    %59 = arith.addf %58, %57 : vector<2x128xf32>
    %60 = arith.divf %58, %59 : vector<2x128xf32>
    %61 = math.tanh %55 : vector<2x128xf32>
    %62 = arith.select %12, %61, %60 : vector<2x128xi1>, vector<2x128xf32>
    %63 = vector.extract_strided_slice %62 {offsets = [0, 0], sizes = [2, 32], strides = [1, 1]} : vector<2x128xf32> to vector<2x32xf32>
    %64 = vector.extract_strided_slice %62 {offsets = [0, 32], sizes = [2, 32], strides = [1, 1]} : vector<2x128xf32> to vector<2x32xf32>
    %65 = vector.extract_strided_slice %62 {offsets = [0, 64], sizes = [2, 32], strides = [1, 1]} : vector<2x128xf32> to vector<2x32xf32>
    %66 = vector.extract_strided_slice %62 {offsets = [0, 96], sizes = [2, 32], strides = [1, 1]} : vector<2x128xf32> to vector<2x32xf32>
    %67 = arith.mulf %64, %50 : vector<2x32xf32>
    %68 = arith.mulf %63, %65 : vector<2x32xf32>
    %69 = arith.addf %67, %68 : vector<2x32xf32>
    %70 = math.tanh %69 : vector<2x32xf32>
    %71 = arith.mulf %66, %70 : vector<2x32xf32>
    %72 = vector.extract_strided_slice %5 {offsets = [6, 0], sizes = [2, 128], strides = [1, 1]} : vector<16x128xf32> to vector<2x128xf32>
    %cst_15 = arith.constant dense<0.000000e+00> : vector<2x128xf32>
    %73 = tpu.matmul %71, %6, %cst_15 {dimension_numbers = #tpu.dot_dimension_numbers<[1], [0], [0], [1], [0, 0, 1, 1], [], []>} : vector<2x32xf32>, vector<32x128xf32>, vector<2x128xf32> -> vector<2x128xf32>
    %74 = arith.addf %72, %73 : vector<2x128xf32>
    %75 = arith.negf %74 : vector<2x128xf32>
    %76 = math.exp %75 : vector<2x128xf32>
    %cst_16 = arith.constant 1.000000e+00 : f32
    %77 = vector.broadcast %cst_16 : f32 to vector<2x128xf32>
    %78 = arith.addf %77, %76 : vector<2x128xf32>
    %79 = arith.divf %77, %78 : vector<2x128xf32>
    %80 = math.tanh %74 : vector<2x128xf32>
    %81 = arith.select %12, %80, %79 : vector<2x128xi1>, vector<2x128xf32>
    %82 = vector.extract_strided_slice %81 {offsets = [0, 0], sizes = [2, 32], strides = [1, 1]} : vector<2x128xf32> to vector<2x32xf32>
    %83 = vector.extract_strided_slice %81 {offsets = [0, 32], sizes = [2, 32], strides = [1, 1]} : vector<2x128xf32> to vector<2x32xf32>
    %84 = vector.extract_strided_slice %81 {offsets = [0, 64], sizes = [2, 32], strides = [1, 1]} : vector<2x128xf32> to vector<2x32xf32>
    %85 = vector.extract_strided_slice %81 {offsets = [0, 96], sizes = [2, 32], strides = [1, 1]} : vector<2x128xf32> to vector<2x32xf32>
    %86 = arith.mulf %83, %69 : vector<2x32xf32>
    %87 = arith.mulf %82, %84 : vector<2x32xf32>
    %88 = arith.addf %86, %87 : vector<2x32xf32>
    %89 = math.tanh %88 : vector<2x32xf32>
    %90 = arith.mulf %85, %89 : vector<2x32xf32>
    %91 = vector.extract_strided_slice %5 {offsets = [8, 0], sizes = [2, 128], strides = [1, 1]} : vector<16x128xf32> to vector<2x128xf32>
    %cst_17 = arith.constant dense<0.000000e+00> : vector<2x128xf32>
    %92 = tpu.matmul %90, %6, %cst_17 {dimension_numbers = #tpu.dot_dimension_numbers<[1], [0], [0], [1], [0, 0, 1, 1], [], []>} : vector<2x32xf32>, vector<32x128xf32>, vector<2x128xf32> -> vector<2x128xf32>
    %93 = arith.addf %91, %92 : vector<2x128xf32>
    %94 = arith.negf %93 : vector<2x128xf32>
    %95 = math.exp %94 : vector<2x128xf32>
    %cst_18 = arith.constant 1.000000e+00 : f32
    %96 = vector.broadcast %cst_18 : f32 to vector<2x128xf32>
    %97 = arith.addf %96, %95 : vector<2x128xf32>
    %98 = arith.divf %96, %97 : vector<2x128xf32>
    %99 = math.tanh %93 : vector<2x128xf32>
    %100 = arith.select %12, %99, %98 : vector<2x128xi1>, vector<2x128xf32>
    %101 = vector.extract_strided_slice %100 {offsets = [0, 0], sizes = [2, 32], strides = [1, 1]} : vector<2x128xf32> to vector<2x32xf32>
    %102 = vector.extract_strided_slice %100 {offsets = [0, 32], sizes = [2, 32], strides = [1, 1]} : vector<2x128xf32> to vector<2x32xf32>
    %103 = vector.extract_strided_slice %100 {offsets = [0, 64], sizes = [2, 32], strides = [1, 1]} : vector<2x128xf32> to vector<2x32xf32>
    %104 = vector.extract_strided_slice %100 {offsets = [0, 96], sizes = [2, 32], strides = [1, 1]} : vector<2x128xf32> to vector<2x32xf32>
    %105 = arith.mulf %102, %88 : vector<2x32xf32>
    %106 = arith.mulf %101, %103 : vector<2x32xf32>
    %107 = arith.addf %105, %106 : vector<2x32xf32>
    %108 = math.tanh %107 : vector<2x32xf32>
    %109 = arith.mulf %104, %108 : vector<2x32xf32>
    %110 = vector.extract_strided_slice %5 {offsets = [10, 0], sizes = [2, 128], strides = [1, 1]} : vector<16x128xf32> to vector<2x128xf32>
    %cst_19 = arith.constant dense<0.000000e+00> : vector<2x128xf32>
    %111 = tpu.matmul %109, %6, %cst_19 {dimension_numbers = #tpu.dot_dimension_numbers<[1], [0], [0], [1], [0, 0, 1, 1], [], []>} : vector<2x32xf32>, vector<32x128xf32>, vector<2x128xf32> -> vector<2x128xf32>
    %112 = arith.addf %110, %111 : vector<2x128xf32>
    %113 = arith.negf %112 : vector<2x128xf32>
    %114 = math.exp %113 : vector<2x128xf32>
    %cst_20 = arith.constant 1.000000e+00 : f32
    %115 = vector.broadcast %cst_20 : f32 to vector<2x128xf32>
    %116 = arith.addf %115, %114 : vector<2x128xf32>
    %117 = arith.divf %115, %116 : vector<2x128xf32>
    %118 = math.tanh %112 : vector<2x128xf32>
    %119 = arith.select %12, %118, %117 : vector<2x128xi1>, vector<2x128xf32>
    %120 = vector.extract_strided_slice %119 {offsets = [0, 0], sizes = [2, 32], strides = [1, 1]} : vector<2x128xf32> to vector<2x32xf32>
    %121 = vector.extract_strided_slice %119 {offsets = [0, 32], sizes = [2, 32], strides = [1, 1]} : vector<2x128xf32> to vector<2x32xf32>
    %122 = vector.extract_strided_slice %119 {offsets = [0, 64], sizes = [2, 32], strides = [1, 1]} : vector<2x128xf32> to vector<2x32xf32>
    %123 = vector.extract_strided_slice %119 {offsets = [0, 96], sizes = [2, 32], strides = [1, 1]} : vector<2x128xf32> to vector<2x32xf32>
    %124 = arith.mulf %121, %107 : vector<2x32xf32>
    %125 = arith.mulf %120, %122 : vector<2x32xf32>
    %126 = arith.addf %124, %125 : vector<2x32xf32>
    %127 = math.tanh %126 : vector<2x32xf32>
    %128 = arith.mulf %123, %127 : vector<2x32xf32>
    %129 = vector.extract_strided_slice %5 {offsets = [12, 0], sizes = [2, 128], strides = [1, 1]} : vector<16x128xf32> to vector<2x128xf32>
    %cst_21 = arith.constant dense<0.000000e+00> : vector<2x128xf32>
    %130 = tpu.matmul %128, %6, %cst_21 {dimension_numbers = #tpu.dot_dimension_numbers<[1], [0], [0], [1], [0, 0, 1, 1], [], []>} : vector<2x32xf32>, vector<32x128xf32>, vector<2x128xf32> -> vector<2x128xf32>
    %131 = arith.addf %129, %130 : vector<2x128xf32>
    %132 = arith.negf %131 : vector<2x128xf32>
    %133 = math.exp %132 : vector<2x128xf32>
    %cst_22 = arith.constant 1.000000e+00 : f32
    %134 = vector.broadcast %cst_22 : f32 to vector<2x128xf32>
    %135 = arith.addf %134, %133 : vector<2x128xf32>
    %136 = arith.divf %134, %135 : vector<2x128xf32>
    %137 = math.tanh %131 : vector<2x128xf32>
    %138 = arith.select %12, %137, %136 : vector<2x128xi1>, vector<2x128xf32>
    %139 = vector.extract_strided_slice %138 {offsets = [0, 0], sizes = [2, 32], strides = [1, 1]} : vector<2x128xf32> to vector<2x32xf32>
    %140 = vector.extract_strided_slice %138 {offsets = [0, 32], sizes = [2, 32], strides = [1, 1]} : vector<2x128xf32> to vector<2x32xf32>
    %141 = vector.extract_strided_slice %138 {offsets = [0, 64], sizes = [2, 32], strides = [1, 1]} : vector<2x128xf32> to vector<2x32xf32>
    %142 = vector.extract_strided_slice %138 {offsets = [0, 96], sizes = [2, 32], strides = [1, 1]} : vector<2x128xf32> to vector<2x32xf32>
    %143 = arith.mulf %140, %126 : vector<2x32xf32>
    %144 = arith.mulf %139, %141 : vector<2x32xf32>
    %145 = arith.addf %143, %144 : vector<2x32xf32>
    %146 = math.tanh %145 : vector<2x32xf32>
    %147 = arith.mulf %142, %146 : vector<2x32xf32>
    %148 = vector.extract_strided_slice %5 {offsets = [14, 0], sizes = [2, 128], strides = [1, 1]} : vector<16x128xf32> to vector<2x128xf32>
    %cst_23 = arith.constant dense<0.000000e+00> : vector<2x128xf32>
    %149 = tpu.matmul %147, %6, %cst_23 {dimension_numbers = #tpu.dot_dimension_numbers<[1], [0], [0], [1], [0, 0, 1, 1], [], []>} : vector<2x32xf32>, vector<32x128xf32>, vector<2x128xf32> -> vector<2x128xf32>
    %150 = arith.addf %148, %149 : vector<2x128xf32>
    %151 = arith.negf %150 : vector<2x128xf32>
    %152 = math.exp %151 : vector<2x128xf32>
    %cst_24 = arith.constant 1.000000e+00 : f32
    %153 = vector.broadcast %cst_24 : f32 to vector<2x128xf32>
    %154 = arith.addf %153, %152 : vector<2x128xf32>
    %155 = arith.divf %153, %154 : vector<2x128xf32>
    %156 = math.tanh %150 : vector<2x128xf32>
    %157 = arith.select %12, %156, %155 : vector<2x128xi1>, vector<2x128xf32>
    %158 = vector.extract_strided_slice %157 {offsets = [0, 0], sizes = [2, 32], strides = [1, 1]} : vector<2x128xf32> to vector<2x32xf32>
    %159 = vector.extract_strided_slice %157 {offsets = [0, 32], sizes = [2, 32], strides = [1, 1]} : vector<2x128xf32> to vector<2x32xf32>
    %160 = vector.extract_strided_slice %157 {offsets = [0, 64], sizes = [2, 32], strides = [1, 1]} : vector<2x128xf32> to vector<2x32xf32>
    %161 = vector.extract_strided_slice %157 {offsets = [0, 96], sizes = [2, 32], strides = [1, 1]} : vector<2x128xf32> to vector<2x32xf32>
    %162 = arith.mulf %159, %145 : vector<2x32xf32>
    %163 = arith.mulf %158, %160 : vector<2x32xf32>
    %164 = arith.addf %162, %163 : vector<2x32xf32>
    %165 = math.tanh %164 : vector<2x32xf32>
    %166 = arith.mulf %161, %165 : vector<2x32xf32>
    %c0_25 = arith.constant 0 : index
    %c0_26 = arith.constant 0 : index
    %167 = vector.load %arg4[%c0_25, %c0_26] : memref<32x128xf32, #tpu.memory_space<vmem>>, vector<32x128xf32>
    %cst_27 = arith.constant dense<0.000000e+00> : vector<2x128xf32>
    %168 = tpu.matmul %166, %167, %cst_27 {dimension_numbers = #tpu.dot_dimension_numbers<[1], [0], [0], [1], [0, 0, 1, 1], [], []>} : vector<2x32xf32>, vector<32x128xf32>, vector<2x128xf32> -> vector<2x128xf32>
    %c0_28 = arith.constant 0 : index
    %c0_29 = arith.constant 0 : index
    %169 = vector.load %arg5[%c0_28, %c0_29] : memref<1x128xf32, #tpu.memory_space<vmem>>, vector<1x128xf32>
    %170 = vector.broadcast %169 : vector<1x128xf32> to vector<2x128xf32>
    %171 = arith.addf %168, %170 : vector<2x128xf32>
    %cst_30 = arith.constant dense<0xFF800000> : vector<2xf32>
    %172 = vector.multi_reduction <maximumf>, %171, %cst_30 [1] : vector<2x128xf32> to vector<2xf32>
    %173 = vector.shape_cast %172 : vector<2xf32> to vector<2x1xf32>
    %174 = vector.broadcast %173 : vector<2x1xf32> to vector<2x128xf32>
    %175 = arith.subf %171, %174 : vector<2x128xf32>
    %176 = math.exp %175 : vector<2x128xf32>
    %cst_31 = arith.constant dense<0.000000e+00> : vector<2xf32>
    %177 = vector.multi_reduction <add>, %176, %cst_31 [1] : vector<2x128xf32> to vector<2xf32>
    %178 = vector.shape_cast %177 : vector<2xf32> to vector<2x1xf32>
    %179 = vector.broadcast %178 : vector<2x1xf32> to vector<2x128xf32>
    %180 = arith.divf %176, %179 : vector<2x128xf32>
    %181 = vector.extract_strided_slice %180 {offsets = [0, 0], sizes = [2, 2], strides = [1, 1]} : vector<2x128xf32> to vector<2x2xf32>
    %c0_32 = arith.constant 0 : index
    %c0_33 = arith.constant 0 : index
    %182 = vector.load %arg6[%c0_32, %c0_33] : memref<2x2xf32, #tpu.memory_space<vmem>>, vector<2x2xf32>
    tpu.vector_store %arg6[%c0_32, %c0_33], %181 {strides = array<i32>} : memref<2x2xf32, #tpu.memory_space<vmem>>, vector<2x2xf32>,
    %c0_34 = arith.constant 0 : index
    %c0_35 = arith.constant 0 : index
    %183 = vector.load %arg7[%c0_34, %c0_35] : memref<2x32xf32, #tpu.memory_space<vmem>>, vector<2x32xf32>
    tpu.vector_store %arg7[%c0_34, %c0_35], %166 {strides = array<i32>} : memref<2x32xf32, #tpu.memory_space<vmem>>, vector<2x32xf32>,
    %c0_36 = arith.constant 0 : index
    %c0_37 = arith.constant 0 : index
    %184 = vector.load %arg8[%c0_36, %c0_37] : memref<2x32xf32, #tpu.memory_space<vmem>>, vector<2x32xf32>
    tpu.vector_store %arg8[%c0_36, %c0_37], %164 {strides = array<i32>} : memref<2x32xf32, #tpu.memory_space<vmem>>, vector<2x32xf32>,
    return
  }
}

</mosaic_0001>

<llo_original>
// kernel: my_lstm_forward.1
$region0: #{my_lstm_forward.1}
  #allocation0 [shape = 'u32[]', space=smem, size = 0x4, offset = 0x4, fixed_abs, tag = 'smem constant byte address 0x4 - core index']
  #allocation1 [shape = 'u32[144,128]{1,0:T(1,128)}', space=vmem, size = 0x12000, scoped, tag = 'internal scratch']
  %s0 = inlined_call_operand.vmem [shape: f32[16,4], index: 0, kind: input, shape index: {}]
  %s1 = inlined_call_operand.vmem [shape: f32[4,128], index: 1, kind: input, shape index: {}]
  %s2 = inlined_call_operand.vmem [shape: f32[1,128], index: 2, kind: input, shape index: {}]
  %s3 = inlined_call_operand.vmem [shape: f32[32,128], index: 3, kind: input, shape index: {}]
  %s4 = inlined_call_operand.vmem [shape: f32[32,128], index: 4, kind: input, shape index: {}]
  %s5 = inlined_call_operand.vmem [shape: f32[1,128], index: 5, kind: input, shape index: {}]
  %s6 = inlined_call_operand.hbm [shape: f32[2,2], index: 6, kind: output, shape index: {0}]
  %s7 = inlined_call_operand.hbm [shape: f32[2,32], index: 7, kind: output, shape index: {1}]
  %s8 = inlined_call_operand.hbm [shape: f32[2,32], index: 8, kind: output, shape index: {2}]
  %9 = xla_tuple %s6, %s7, %s8
  %s10 = sld [smem:[#allocation0]]
  $region50: #{my_lstm_forward.1} parent=0
    _
  %s12 = ssub.s32 1, %s10
  %s13 = scalar_select 0, %s12, %s10
  $region1: #{my_lstm_forward.1} parent=0
    #allocation2 [shape = 'u8[1024]{0}', space=vmem, size = 0x400, scoped, tag = 'output window, operand 0, single buffered']
    #allocation3 [shape = 's32[1]{0}', space=sflag, size = 0x4, scoped, tag = 'scoped memory for my_lstm_forward.1']
    #allocation4 [shape = 'u8[1024]{0}', space=vmem, size = 0x400, scoped, tag = 'output window, operand 1, single buffered']
    #allocation5 [shape = 's32[1]{0}', space=sflag, size = 0x4, scoped, tag = 'scoped memory for my_lstm_forward.1']
    #allocation6 [shape = 'u8[1024]{0}', space=vmem, size = 0x400, scoped, tag = 'output window, operand 2, single buffered']
    %14 = vsyncpa [#allocation3], 0
    %15 = vsyncpa [#allocation5], 0
    // Predicated region
    $region2: #{my_lstm_forward.1} parent=1 // pred_check
      _
    $region3: #{my_lstm_forward.1} parent=1 // pred_check_branch
      %17 = sbr.rel (0) target = $region5
    $region4: #{my_lstm_forward.1} parent=1 // pred_region
      _
    $region5: #{my_lstm_forward.1} parent=1 // pred_fallthru
      _
    // Predicated region
    $region6: #{my_lstm_forward.1} parent=1 // pred_check
      _
    $region7: #{my_lstm_forward.1} parent=1 // pred_check_branch
      %19 = sbr.rel (0) target = $region9
    $region8: #{my_lstm_forward.1} parent=1 // pred_region
      _
    $region9: #{my_lstm_forward.1} parent=1 // pred_fallthru
      _
    // Predicated region
    $region10: #{my_lstm_forward.1} parent=1 // pred_check
      _
    $region11: #{my_lstm_forward.1} parent=1 // pred_check_branch
      %21 = sbr.rel (0) target = $region13
    $region12: #{my_lstm_forward.1} parent=1 // pred_region
      _
    $region13: #{my_lstm_forward.1} parent=1 // pred_fallthru
      _
    // Predicated region
    $region14: #{my_lstm_forward.1} parent=1 // pred_check
      _
    $region15: #{my_lstm_forward.1} parent=1 // pred_check_branch
      %23 = sbr.rel (0) target = $region17
    $region16: #{my_lstm_forward.1} parent=1 // pred_region
      _
    $region17: #{my_lstm_forward.1} parent=1 // pred_fallthru
      _
    // Predicated region
    $region18: #{my_lstm_forward.1} parent=1 // pred_check
      _
    $region19: #{my_lstm_forward.1} parent=1 // pred_check_branch
      %25 = sbr.rel (0) target = $region21
    $region20: #{my_lstm_forward.1} parent=1 // pred_region
      _
    $region21: #{my_lstm_forward.1} parent=1 // pred_fallthru
      _
    // Predicated region
    $region22: #{my_lstm_forward.1} parent=1 // pred_check
      _
    $region23: #{my_lstm_forward.1} parent=1 // pred_check_branch
      %27 = sbr.rel (0) target = $region25
    $region24: #{my_lstm_forward.1} parent=1 // pred_region
      _
    $region25: #{my_lstm_forward.1} parent=1 // pred_fallthru
      _
    %v28 = vld [vmem:[%s0] sm:$0xff]
    %v29 = vld [vmem:[%s0 + $0x8] sm:$0xff]
    %v30 = vld [vmem:[%s1] sm:$0xf]
    %v31 = vld [vmem:[%s2] sm:$0x1]
    %v33 = vlaneseq
    %v34 = vshrl.u32 %v33, 7
    %v35 = vsub.s32 0, %v34
    %v36 = vrot.slane %v31, %v35
    %vm38 = vcmask 31744
    %v40 = vsel %vm38, %v28, 0
    %v43 = vsel %vm38, %v29, 0
    %vm45 = vcmask 1043456
    %v47 = vsel %vm45, %v30, 0
    %49 = vmatprep.subr.mxu0 0.0
    %50 = vmatpush1.msra.mxu0 %v47
    %51 = vmatprep.subr.mxu0 0.0
    %52 = vmatpush1.msra.mxu0 0.0
    %53 = vmatprep.subr.mxu0 0.0
    %54 = vmatpush1.msra.mxu0 0.0
    %55 = vmatprep.subr.mxu0 0.0
    %56 = vmatpush1.msra.mxu0 0.0
    %57 = vmatprep.subr.mxu0 0.0
    %58 = vmatpush1.msra.mxu0 0.0
    %59 = vmatprep.subr.mxu0 0.0
    %60 = vmatpush1.msra.mxu0 0.0
    %61 = vmatprep.subr.mxu0 0.0
    %62 = vmatpush1.msra.mxu0 0.0
    %63 = vmatprep.subr.mxu0 0.0
    %64 = vmatpush1.msra.mxu0 0.0
    %65 = vmatprep.subr.mxu0 0.0
    %66 = vmatpush1.msra.mxu0 0.0
    %67 = vmatprep.subr.mxu0 0.0
    %68 = vmatpush1.msra.mxu0 0.0
    %69 = vmatprep.subr.mxu0 0.0
    %70 = vmatpush1.msra.mxu0 0.0
    %71 = vmatprep.subr.mxu0 0.0
    %72 = vmatpush1.msra.mxu0 0.0
    %73 = vmatprep.subr.mxu0 0.0
    %74 = vmatpush1.msra.mxu0 0.0
    %75 = vmatprep.subr.mxu0 0.0
    %76 = vmatpush1.msra.mxu0 0.0
    %77 = vmatprep.subr.mxu0 0.0
    %78 = vmatpush1.msra.mxu0 0.0
    %79 = vmatprep.subr.mxu0 0.0
    %80 = vmatpush1.msra.mxu0 0.0
    %81 = vmatprep.subr.mxu0 0.0
    %82 = vmatpush1.msra.mxu0 0.0
    %83 = vmatprep.subr.mxu0 0.0
    %84 = vmatpush1.msra.mxu0 0.0
    %85 = vmatprep.subr.mxu0 0.0
    %86 = vmatpush1.msra.mxu0 0.0
    %87 = vmatprep.subr.mxu0 0.0
    %88 = vmatpush1.msra.mxu0 0.0
    %89 = vmatprep.subr.mxu0 0.0
    %90 = vmatpush1.msra.mxu0 0.0
    %91 = vmatprep.subr.mxu0 0.0
    %92 = vmatpush1.msra.mxu0 0.0
    %93 = vmatprep.subr.mxu0 0.0
    %94 = vmatpush1.msra.mxu0 0.0
    %95 = vmatprep.subr.mxu0 0.0
    %96 = vmatpush1.msra.mxu0 0.0
    %97 = vmatprep.subr.mxu0 0.0
    %98 = vmatpush1.msra.mxu0 0.0
    %99 = vmatprep.subr.mxu0 0.0
    %100 = vmatpush1.msra.mxu0 0.0
    %101 = vmatprep.subr.mxu0 0.0
    %102 = vmatpush1.msra.mxu0 0.0
    %103 = vmatprep.subr.mxu0 0.0
    %104 = vmatpush1.msra.mxu0 0.0
    %105 = vmatprep.subr.mxu0 0.0
    %106 = vmatpush1.msra.mxu0 0.0
    %107 = vmatprep.subr.mxu0 0.0
    %108 = vmatpush1.msra.mxu0 0.0
    %109 = vmatprep.subr.mxu0 0.0
    %110 = vmatpush1.msra.mxu0 0.0
    %111 = vmatprep.subr.mxu0 0.0
    %112 = vmatpush1.msra.mxu0 0.0
    %113 = vmatprep.mubr.f32.mxu0 0.0
    %114 = vmatmul.mubr.f32.gmra.mrb[0].mxu0 %v40
    %v115 = vpop.f32.mrb[0].mxu0
    %v116 = vadd.f32 %v36, %v115
    %v117 = vpop.f32.mrb[0].mxu0
    %118 = vmatprep.mubr.f32.mxu0 0.0
    %119 = vmatmul.mubr.f32.gmra.mrb[0].mxu0 %v43
    %v120 = vpop.f32.mrb[0].mxu0
    %v121 = vadd.f32 %v36, %v120
    %v122 = vpop.f32.mrb[0].mxu0
    %123 = vdwg.mxu0
    %v124 = vld [vmem:[%s3] sm:$0xff]
    %v125 = vld [vmem:[%s3 + $0x8] sm:$0xff]
    %v126 = vld [vmem:[%s3 + $0x10] sm:$0xff]
    %v127 = vld [vmem:[%s3 + $0x18] sm:$0xff]
    %v128 = vlaneseq
    %v129 = vand.u32 %v128, 127
    %vm130 = vcmp.ge.s32.totalorder %v129, 64
    %vm131 = vcmp.lt.s32.totalorder %v129, 96
    %vm132 = vmand %vm130, %vm131
    %vm133 = vcmask 261120
    %v135 = vsel %vm133, 0.0, 0
    %137 = vmatprep.subr.mxu0 0.0
    %138 = vmatpush1.msra.mxu0 %v124
    %139 = vmatprep.subr.mxu0 0.0
    %140 = vmatpush1.msra.mxu0 %v125
    %141 = vmatprep.subr.mxu0 0.0
    %142 = vmatpush1.msra.mxu0 %v126
    %143 = vmatprep.subr.mxu0 0.0
    %144 = vmatpush1.msra.mxu0 %v127
    %145 = vmatprep.subr.mxu0 0.0
    %146 = vmatpush1.msra.mxu0 0.0
    %147 = vmatprep.subr.mxu0 0.0
    %148 = vmatpush1.msra.mxu0 0.0
    %149 = vmatprep.subr.mxu0 0.0
    %150 = vmatpush1.msra.mxu0 0.0
    %151 = vmatprep.subr.mxu0 0.0
    %152 = vmatpush1.msra.mxu0 0.0
    %153 = vmatprep.subr.mxu0 0.0
    %154 = vmatpush1.msra.mxu0 0.0
    %155 = vmatprep.subr.mxu0 0.0
    %156 = vmatpush1.msra.mxu0 0.0
    %157 = vmatprep.subr.mxu0 0.0
    %158 = vmatpush1.msra.mxu0 0.0
    %159 = vmatprep.subr.mxu0 0.0
    %160 = vmatpush1.msra.mxu0 0.0
    %161 = vmatprep.subr.mxu0 0.0
    %162 = vmatpush1.msra.mxu0 0.0
    %163 = vmatprep.subr.mxu0 0.0
    %164 = vmatpush1.msra.mxu0 0.0
    %165 = vmatprep.subr.mxu0 0.0
    %166 = vmatpush1.msra.mxu0 0.0
    %167 = vmatprep.subr.mxu0 0.0
    %168 = vmatpush1.msra.mxu0 0.0
    %169 = vmatprep.subr.mxu0 0.0
    %170 = vmatpush1.msra.mxu0 0.0
    %171 = vmatprep.subr.mxu0 0.0
    %172 = vmatpush1.msra.mxu0 0.0
    %173 = vmatprep.subr.mxu0 0.0
    %174 = vmatpush1.msra.mxu0 0.0
    %175 = vmatprep.subr.mxu0 0.0
    %176 = vmatpush1.msra.mxu0 0.0
    %177 = vmatprep.subr.mxu0 0.0
    %178 = vmatpush1.msra.mxu0 0.0
    %179 = vmatprep.subr.mxu0 0.0
    %180 = vmatpush1.msra.mxu0 0.0
    %181 = vmatprep.subr.mxu0 0.0
    %182 = vmatpush1.msra.mxu0 0.0
    %183 = vmatprep.subr.mxu0 0.0
    %184 = vmatpush1.msra.mxu0 0.0
    %185 = vmatprep.subr.mxu0 0.0
    %186 = vmatpush1.msra.mxu0 0.0
    %187 = vmatprep.subr.mxu0 0.0
    %188 = vmatpush1.msra.mxu0 0.0
    %189 = vmatprep.subr.mxu0 0.0
    %190 = vmatpush1.msra.mxu0 0.0
    %191 = vmatprep.subr.mxu0 0.0
    %192 = vmatpush1.msra.mxu0 0.0
    %193 = vmatprep.subr.mxu0 0.0
    %194 = vmatpush1.msra.mxu0 0.0
    %195 = vmatprep.subr.mxu0 0.0
    %196 = vmatpush1.msra.mxu0 0.0
    %197 = vmatprep.subr.mxu0 0.0
    %198 = vmatpush1.msra.mxu0 0.0
    %199 = vmatprep.subr.mxu0 0.0
    %200 = vmatpush1.msra.mxu0 0.0
    %201 = vmatprep.mubr.f32.mxu0 0.0
    %202 = vmatmul.mubr.f32.gmra.mrb[0].mxu0 %v135
    %v203 = vpop.f32.mrb[0].mxu0
    %v204 = vadd.f32 0.0, %v203
    %v205 = vpop.f32.mrb[0].mxu0
    %206 = vdwg.mxu0
    %v207 = vadd.f32 %v116, %v204
    %v208 = vxor.u32 %v207, 2147483648
    %v209 = vmul.f32 %v208, 1.442695
    %v210 = vpow.pop %v209
    %v211 = vadd.f32 %v210, 1.0
    %v212 = vrcp.pop %v211
    %v213 = vmul.f32 1.0, %v212
    %v214 = vtanh.pop %v207
    %v215 = vsel %vm132, %v214, %v213
    %v216 = vmul.f32 %v215, 0.0
    %218 = vrot.lane.b32.xlu0 %v215, 64
    %v219 = vpop.permute.xlu0 %218
    %v221 = vmul.f32 %v215, %v219
    %223 = vrot.lane.b32.xlu0 %v221, 32
    %v224 = vpop.permute.xlu0 %223
    %v226 = vadd.f32 %v216, %v224
    %v227 = vtanh.pop %v226
    %229 = vrot.lane.b32.xlu0 %v227, 64
    %v230 = vpop.permute.xlu0 %229
    %v232 = vmul.f32 %v215, %v230
    %234 = vrot.lane.b32.xlu0 %v232, 32
    %v235 = vpop.permute.xlu0 %234
    %v236 = vsel %vm133, %v235, 0
    %238 = vmatprep.subr.mxu0 0.0
    %239 = vmatpush1.msra.mxu0 %v124
    %240 = vmatprep.subr.mxu0 0.0
    %241 = vmatpush1.msra.mxu0 %v125
    %242 = vmatprep.subr.mxu0 0.0
    %243 = vmatpush1.msra.mxu0 %v126
    %244 = vmatprep.subr.mxu0 0.0
    %245 = vmatpush1.msra.mxu0 %v127
    %246 = vmatprep.subr.mxu0 0.0
    %247 = vmatpush1.msra.mxu0 0.0
    %248 = vmatprep.subr.mxu0 0.0
    %249 = vmatpush1.msra.mxu0 0.0
    %250 = vmatprep.subr.mxu0 0.0
    %251 = vmatpush1.msra.mxu0 0.0
    %252 = vmatprep.subr.mxu0 0.0
    %253 = vmatpush1.msra.mxu0 0.0
    %254 = vmatprep.subr.mxu0 0.0
    %255 = vmatpush1.msra.mxu0 0.0
    %256 = vmatprep.subr.mxu0 0.0
    %257 = vmatpush1.msra.mxu0 0.0
    %258 = vmatprep.subr.mxu0 0.0
    %259 = vmatpush1.msra.mxu0 0.0
    %260 = vmatprep.subr.mxu0 0.0
    %261 = vmatpush1.msra.mxu0 0.0
    %262 = vmatprep.subr.mxu0 0.0
    %263 = vmatpush1.msra.mxu0 0.0
    %264 = vmatprep.subr.mxu0 0.0
    %265 = vmatpush1.msra.mxu0 0.0
    %266 = vmatprep.subr.mxu0 0.0
    %267 = vmatpush1.msra.mxu0 0.0
    %268 = vmatprep.subr.mxu0 0.0
    %269 = vmatpush1.msra.mxu0 0.0
    %270 = vmatprep.subr.mxu0 0.0
    %271 = vmatpush1.msra.mxu0 0.0
    %272 = vmatprep.subr.mxu0 0.0
    %273 = vmatpush1.msra.mxu0 0.0
    %274 = vmatprep.subr.mxu0 0.0
    %275 = vmatpush1.msra.mxu0 0.0
    %276 = vmatprep.subr.mxu0 0.0
    %277 = vmatpush1.msra.mxu0 0.0
    %278 = vmatprep.subr.mxu0 0.0
    %279 = vmatpush1.msra.mxu0 0.0
    %280 = vmatprep.subr.mxu0 0.0
    %281 = vmatpush1.msra.mxu0 0.0
    %282 = vmatprep.subr.mxu0 0.0
    %283 = vmatpush1.msra.mxu0 0.0
    %284 = vmatprep.subr.mxu0 0.0
    %285 = vmatpush1.msra.mxu0 0.0
    %286 = vmatprep.subr.mxu0 0.0
    %287 = vmatpush1.msra.mxu0 0.0
    %288 = vmatprep.subr.mxu0 0.0
    %289 = vmatpush1.msra.mxu0 0.0
    %290 = vmatprep.subr.mxu0 0.0
    %291 = vmatpush1.msra.mxu0 0.0
    %292 = vmatprep.subr.mxu0 0.0
    %293 = vmatpush1.msra.mxu0 0.0
    %294 = vmatprep.subr.mxu0 0.0
    %295 = vmatpush1.msra.mxu0 0.0
    %296 = vmatprep.subr.mxu0 0.0
    %297 = vmatpush1.msra.mxu0 0.0
    %298 = vmatprep.subr.mxu0 0.0
    %299 = vmatpush1.msra.mxu0 0.0
    %300 = vmatprep.subr.mxu0 0.0
    %301 = vmatpush1.msra.mxu0 0.0
    %302 = vmatprep.mubr.f32.mxu0 0.0
    %303 = vmatmul.mubr.f32.gmra.mrb[0].mxu0 %v236
    %v304 = vpop.f32.mrb[0].mxu0
    %v305 = vadd.f32 0.0, %v304
    %v306 = vpop.f32.mrb[0].mxu0
    %307 = vdwg.mxu0
    %v309 = vrot.slane %v305, 6
    %v311 = vadd.f32 %v116, %v309
    %v312 = vxor.u32 %v311, 2147483648
    %v313 = vmul.f32 %v312, 1.442695
    %v314 = vpow.pop %v313
    %v315 = vadd.f32 %v314, 1.0
    %v316 = vrcp.pop %v315
    %v317 = vmul.f32 1.0, %v316
    %v318 = vtanh.pop %v311
    %v319 = vsel %vm132, %v318, %v317
    %v321 = vrot.slane %v226, 6
    %v323 = vmul.f32 %v319, %v321
    %325 = vrot.lane.b32.xlu0 %v319, 64
    %v326 = vpop.permute.xlu0 %325
    %v328 = vmul.f32 %v319, %v326
    %330 = vrot.lane.b32.xlu0 %v328, 32
    %v331 = vpop.permute.xlu0 %330
    %v333 = vadd.f32 %v323, %v331
    %v334 = vtanh.pop %v333
    %336 = vrot.lane.b32.xlu0 %v334, 64
    %v337 = vpop.permute.xlu0 %336
    %v339 = vmul.f32 %v319, %v337
    %v341 = vrot.slane %v339, 2
    %342 = vrot.lane.b32.xlu0 %v341, 32
    %v343 = vpop.permute.xlu0 %342
    %v344 = vsel %vm133, %v343, 0
    %346 = vmatprep.subr.mxu0 0.0
    %347 = vmatpush1.msra.mxu0 %v124
    %348 = vmatprep.subr.mxu0 0.0
    %349 = vmatpush1.msra.mxu0 %v125
    %350 = vmatprep.subr.mxu0 0.0
    %351 = vmatpush1.msra.mxu0 %v126
    %352 = vmatprep.subr.mxu0 0.0
    %353 = vmatpush1.msra.mxu0 %v127
    %354 = vmatprep.subr.mxu0 0.0
    %355 = vmatpush1.msra.mxu0 0.0
    %356 = vmatprep.subr.mxu0 0.0
    %357 = vmatpush1.msra.mxu0 0.0
    %358 = vmatprep.subr.mxu0 0.0
    %359 = vmatpush1.msra.mxu0 0.0
    %360 = vmatprep.subr.mxu0 0.0
    %361 = vmatpush1.msra.mxu0 0.0
    %362 = vmatprep.subr.mxu0 0.0
    %363 = vmatpush1.msra.mxu0 0.0
    %364 = vmatprep.subr.mxu0 0.0
    %365 = vmatpush1.msra.mxu0 0.0
    %366 = vmatprep.subr.mxu0 0.0
    %367 = vmatpush1.msra.mxu0 0.0
    %368 = vmatprep.subr.mxu0 0.0
    %369 = vmatpush1.msra.mxu0 0.0
    %370 = vmatprep.subr.mxu0 0.0
    %371 = vmatpush1.msra.mxu0 0.0
    %372 = vmatprep.subr.mxu0 0.0
    %373 = vmatpush1.msra.mxu0 0.0
    %374 = vmatprep.subr.mxu0 0.0
    %375 = vmatpush1.msra.mxu0 0.0
    %376 = vmatprep.subr.mxu0 0.0
    %377 = vmatpush1.msra.mxu0 0.0
    %378 = vmatprep.subr.mxu0 0.0
    %379 = vmatpush1.msra.mxu0 0.0
    %380 = vmatprep.subr.mxu0 0.0
    %381 = vmatpush1.msra.mxu0 0.0
    %382 = vmatprep.subr.mxu0 0.0
    %383 = vmatpush1.msra.mxu0 0.0
    %384 = vmatprep.subr.mxu0 0.0
    %385 = vmatpush1.msra.mxu0 0.0
    %386 = vmatprep.subr.mxu0 0.0
    %387 = vmatpush1.msra.mxu0 0.0
    %388 = vmatprep.subr.mxu0 0.0
    %389 = vmatpush1.msra.mxu0 0.0
    %390 = vmatprep.subr.mxu0 0.0
    %391 = vmatpush1.msra.mxu0 0.0
    %392 = vmatprep.subr.mxu0 0.0
    %393 = vmatpush1.msra.mxu0 0.0
    %394 = vmatprep.subr.mxu0 0.0
    %395 = vmatpush1.msra.mxu0 0.0
    %396 = vmatprep.subr.mxu0 0.0
    %397 = vmatpush1.msra.mxu0 0.0
    %398 = vmatprep.subr.mxu0 0.0
    %399 = vmatpush1.msra.mxu0 0.0
    %400 = vmatprep.subr.mxu0 0.0
    %401 = vmatpush1.msra.mxu0 0.0
    %402 = vmatprep.subr.mxu0 0.0
    %403 = vmatpush1.msra.mxu0 0.0
    %404 = vmatprep.subr.mxu0 0.0
    %405 = vmatpush1.msra.mxu0 0.0
    %406 = vmatprep.subr.mxu0 0.0
    %407 = vmatpush1.msra.mxu0 0.0
    %408 = vmatprep.subr.mxu0 0.0
    %409 = vmatpush1.msra.mxu0 0.0
    %410 = vmatprep.mubr.f32.mxu0 0.0
    %411 = vmatmul.mubr.f32.gmra.mrb[0].mxu0 %v344
    %v412 = vpop.f32.mrb[0].mxu0
    %v413 = vadd.f32 0.0, %v412
    %v414 = vpop.f32.mrb[0].mxu0
    %415 = vdwg.mxu0
    %v417 = vrot.slane %v413, 4
    %v419 = vadd.f32 %v116, %v417
    %v420 = vxor.u32 %v419, 2147483648
    %v421 = vmul.f32 %v420, 1.442695
    %v422 = vpow.pop %v421
    %v423 = vadd.f32 %v422, 1.0
    %v424 = vrcp.pop %v423
    %v425 = vmul.f32 1.0, %v424
    %v426 = vtanh.pop %v419
    %v427 = vsel %vm132, %v426, %v425
    %v429 = vrot.slane %v333, 6
    %v431 = vmul.f32 %v427, %v429
    %433 = vrot.lane.b32.xlu0 %v427, 64
    %v434 = vpop.permute.xlu0 %433
    %v436 = vmul.f32 %v427, %v434
    %438 = vrot.lane.b32.xlu0 %v436, 32
    %v439 = vpop.permute.xlu0 %438
    %v441 = vadd.f32 %v431, %v439
    %v442 = vtanh.pop %v441
    %444 = vrot.lane.b32.xlu0 %v442, 64
    %v445 = vpop.permute.xlu0 %444
    %v447 = vmul.f32 %v427, %v445
    %v449 = vrot.slane %v447, 4
    %450 = vrot.lane.b32.xlu0 %v449, 32
    %v451 = vpop.permute.xlu0 %450
    %v452 = vsel %vm133, %v451, 0
    %454 = vmatprep.subr.mxu0 0.0
    %455 = vmatpush1.msra.mxu0 %v124
    %456 = vmatprep.subr.mxu0 0.0
    %457 = vmatpush1.msra.mxu0 %v125
    %458 = vmatprep.subr.mxu0 0.0
    %459 = vmatpush1.msra.mxu0 %v126
    %460 = vmatprep.subr.mxu0 0.0
    %461 = vmatpush1.msra.mxu0 %v127
    %462 = vmatprep.subr.mxu0 0.0
    %463 = vmatpush1.msra.mxu0 0.0
    %464 = vmatprep.subr.mxu0 0.0
    %465 = vmatpush1.msra.mxu0 0.0
    %466 = vmatprep.subr.mxu0 0.0
    %467 = vmatpush1.msra.mxu0 0.0
    %468 = vmatprep.subr.mxu0 0.0
    %469 = vmatpush1.msra.mxu0 0.0
    %470 = vmatprep.subr.mxu0 0.0
    %471 = vmatpush1.msra.mxu0 0.0
    %472 = vmatprep.subr.mxu0 0.0
    %473 = vmatpush1.msra.mxu0 0.0
    %474 = vmatprep.subr.mxu0 0.0
    %475 = vmatpush1.msra.mxu0 0.0
    %476 = vmatprep.subr.mxu0 0.0
    %477 = vmatpush1.msra.mxu0 0.0
    %478 = vmatprep.subr.mxu0 0.0
    %479 = vmatpush1.msra.mxu0 0.0
    %480 = vmatprep.subr.mxu0 0.0
    %481 = vmatpush1.msra.mxu0 0.0
    %482 = vmatprep.subr.mxu0 0.0
    %483 = vmatpush1.msra.mxu0 0.0
    %484 = vmatprep.subr.mxu0 0.0
    %485 = vmatpush1.msra.mxu0 0.0
    %486 = vmatprep.subr.mxu0 0.0
    %487 = vmatpush1.msra.mxu0 0.0
    %488 = vmatprep.subr.mxu0 0.0
    %489 = vmatpush1.msra.mxu0 0.0
    %490 = vmatprep.subr.mxu0 0.0
    %491 = vmatpush1.msra.mxu0 0.0
    %492 = vmatprep.subr.mxu0 0.0
    %493 = vmatpush1.msra.mxu0 0.0
    %494 = vmatprep.subr.mxu0 0.0
    %495 = vmatpush1.msra.mxu0 0.0
    %496 = vmatprep.subr.mxu0 0.0
    %497 = vmatpush1.msra.mxu0 0.0
    %498 = vmatprep.subr.mxu0 0.0
    %499 = vmatpush1.msra.mxu0 0.0
    %500 = vmatprep.subr.mxu0 0.0
    %501 = vmatpush1.msra.mxu0 0.0
    %502 = vmatprep.subr.mxu0 0.0
    %503 = vmatpush1.msra.mxu0 0.0
    %504 = vmatprep.subr.mxu0 0.0
    %505 = vmatpush1.msra.mxu0 0.0
    %506 = vmatprep.subr.mxu0 0.0
    %507 = vmatpush1.msra.mxu0 0.0
    %508 = vmatprep.subr.mxu0 0.0
    %509 = vmatpush1.msra.mxu0 0.0
    %510 = vmatprep.subr.mxu0 0.0
    %511 = vmatpush1.msra.mxu0 0.0
    %512 = vmatprep.subr.mxu0 0.0
    %513 = vmatpush1.msra.mxu0 0.0
    %514 = vmatprep.subr.mxu0 0.0
    %515 = vmatpush1.msra.mxu0 0.0
    %516 = vmatprep.subr.mxu0 0.0
    %517 = vmatpush1.msra.mxu0 0.0
    %518 = vmatprep.mubr.f32.mxu0 0.0
    %519 = vmatmul.mubr.f32.gmra.mrb[0].mxu0 %v452
    %v520 = vpop.f32.mrb[0].mxu0
    %v521 = vadd.f32 0.0, %v520
    %v522 = vpop.f32.mrb[0].mxu0
    %523 = vdwg.mxu0
    %v525 = vrot.slane %v521, 2
    %v527 = vadd.f32 %v116, %v525
    %v528 = vxor.u32 %v527, 2147483648
    %v529 = vmul.f32 %v528, 1.442695
    %v530 = vpow.pop %v529
    %v531 = vadd.f32 %v530, 1.0
    %v532 = vrcp.pop %v531
    %v533 = vmul.f32 1.0, %v532
    %v534 = vtanh.pop %v527
    %v535 = vsel %vm132, %v534, %v533
    %v537 = vrot.slane %v441, 6
    %v539 = vmul.f32 %v535, %v537
    %541 = vrot.lane.b32.xlu0 %v535, 64
    %v542 = vpop.permute.xlu0 %541
    %v544 = vmul.f32 %v535, %v542
    %546 = vrot.lane.b32.xlu0 %v544, 32
    %v547 = vpop.permute.xlu0 %546
    %v549 = vadd.f32 %v539, %v547
    %v550 = vtanh.pop %v549
    %552 = vrot.lane.b32.xlu0 %v550, 64
    %v553 = vpop.permute.xlu0 %552
    %v555 = vmul.f32 %v535, %v553
    %v557 = vrot.slane %v555, 6
    %558 = vrot.lane.b32.xlu0 %v557, 32
    %v559 = vpop.permute.xlu0 %558
    %v560 = vsel %vm133, %v559, 0
    %562 = vmatprep.subr.mxu0 0.0
    %563 = vmatpush1.msra.mxu0 %v124
    %564 = vmatprep.subr.mxu0 0.0
    %565 = vmatpush1.msra.mxu0 %v125
    %566 = vmatprep.subr.mxu0 0.0
    %567 = vmatpush1.msra.mxu0 %v126
    %568 = vmatprep.subr.mxu0 0.0
    %569 = vmatpush1.msra.mxu0 %v127
    %570 = vmatprep.subr.mxu0 0.0
    %571 = vmatpush1.msra.mxu0 0.0
    %572 = vmatprep.subr.mxu0 0.0
    %573 = vmatpush1.msra.mxu0 0.0
    %574 = vmatprep.subr.mxu0 0.0
    %575 = vmatpush1.msra.mxu0 0.0
    %576 = vmatprep.subr.mxu0 0.0
    %577 = vmatpush1.msra.mxu0 0.0
    %578 = vmatprep.subr.mxu0 0.0
    %579 = vmatpush1.msra.mxu0 0.0
    %580 = vmatprep.subr.mxu0 0.0
    %581 = vmatpush1.msra.mxu0 0.0
    %582 = vmatprep.subr.mxu0 0.0
    %583 = vmatpush1.msra.mxu0 0.0
    %584 = vmatprep.subr.mxu0 0.0
    %585 = vmatpush1.msra.mxu0 0.0
    %586 = vmatprep.subr.mxu0 0.0
    %587 = vmatpush1.msra.mxu0 0.0
    %588 = vmatprep.subr.mxu0 0.0
    %589 = vmatpush1.msra.mxu0 0.0
    %590 = vmatprep.subr.mxu0 0.0
    %591 = vmatpush1.msra.mxu0 0.0
    %592 = vmatprep.subr.mxu0 0.0
    %593 = vmatpush1.msra.mxu0 0.0
    %594 = vmatprep.subr.mxu0 0.0
    %595 = vmatpush1.msra.mxu0 0.0
    %596 = vmatprep.subr.mxu0 0.0
    %597 = vmatpush1.msra.mxu0 0.0
    %598 = vmatprep.subr.mxu0 0.0
    %599 = vmatpush1.msra.mxu0 0.0
    %600 = vmatprep.subr.mxu0 0.0
    %601 = vmatpush1.msra.mxu0 0.0
    %602 = vmatprep.subr.mxu0 0.0
    %603 = vmatpush1.msra.mxu0 0.0
    %604 = vmatprep.subr.mxu0 0.0
    %605 = vmatpush1.msra.mxu0 0.0
    %606 = vmatprep.subr.mxu0 0.0
    %607 = vmatpush1.msra.mxu0 0.0
    %608 = vmatprep.subr.mxu0 0.0
    %609 = vmatpush1.msra.mxu0 0.0
    %610 = vmatprep.subr.mxu0 0.0
    %611 = vmatpush1.msra.mxu0 0.0
    %612 = vmatprep.subr.mxu0 0.0
    %613 = vmatpush1.msra.mxu0 0.0
    %614 = vmatprep.subr.mxu0 0.0
    %615 = vmatpush1.msra.mxu0 0.0
    %616 = vmatprep.subr.mxu0 0.0
    %617 = vmatpush1.msra.mxu0 0.0
    %618 = vmatprep.subr.mxu0 0.0
    %619 = vmatpush1.msra.mxu0 0.0
    %620 = vmatprep.subr.mxu0 0.0
    %621 = vmatpush1.msra.mxu0 0.0
    %622 = vmatprep.subr.mxu0 0.0
    %623 = vmatpush1.msra.mxu0 0.0
    %624 = vmatprep.subr.mxu0 0.0
    %625 = vmatpush1.msra.mxu0 0.0
    %626 = vmatprep.mubr.f32.mxu0 0.0
    %627 = vmatmul.mubr.f32.gmra.mrb[0].mxu0 %v560
    %v628 = vpop.f32.mrb[0].mxu0
    %v629 = vadd.f32 0.0, %v628
    %v630 = vpop.f32.mrb[0].mxu0
    %631 = vdwg.mxu0
    %v632 = vadd.f32 %v121, %v629
    %v633 = vxor.u32 %v632, 2147483648
    %v634 = vmul.f32 %v633, 1.442695
    %v635 = vpow.pop %v634
    %v636 = vadd.f32 %v635, 1.0
    %v637 = vrcp.pop %v636
    %v638 = vmul.f32 1.0, %v637
    %v639 = vtanh.pop %v632
    %v640 = vsel %vm132, %v639, %v638
    %v642 = vrot.slane %v549, 6
    %v644 = vmul.f32 %v640, %v642
    %646 = vrot.lane.b32.xlu0 %v640, 64
    %v647 = vpop.permute.xlu0 %646
    %v649 = vmul.f32 %v640, %v647
    %651 = vrot.lane.b32.xlu0 %v649, 32
    %v652 = vpop.permute.xlu0 %651
    %v654 = vadd.f32 %v644, %v652
    %v655 = vtanh.pop %v654
    %657 = vrot.lane.b32.xlu0 %v655, 64
    %v658 = vpop.permute.xlu0 %657
    %v660 = vmul.f32 %v640, %v658
    %662 = vrot.lane.b32.xlu0 %v660, 32
    %v663 = vpop.permute.xlu0 %662
    %v664 = vsel %vm133, %v663, 0
    %666 = vmatprep.subr.mxu0 0.0
    %667 = vmatpush1.msra.mxu0 %v124
    %668 = vmatprep.subr.mxu0 0.0
    %669 = vmatpush1.msra.mxu0 %v125
    %670 = vmatprep.subr.mxu0 0.0
    %671 = vmatpush1.msra.mxu0 %v126
    %672 = vmatprep.subr.mxu0 0.0
    %673 = vmatpush1.msra.mxu0 %v127
    %674 = vmatprep.subr.mxu0 0.0
    %675 = vmatpush1.msra.mxu0 0.0
    %676 = vmatprep.subr.mxu0 0.0
    %677 = vmatpush1.msra.mxu0 0.0
    %678 = vmatprep.subr.mxu0 0.0
    %679 = vmatpush1.msra.mxu0 0.0
    %680 = vmatprep.subr.mxu0 0.0
    %681 = vmatpush1.msra.mxu0 0.0
    %682 = vmatprep.subr.mxu0 0.0
    %683 = vmatpush1.msra.mxu0 0.0
    %684 = vmatprep.subr.mxu0 0.0
    %685 = vmatpush1.msra.mxu0 0.0
    %686 = vmatprep.subr.mxu0 0.0
    %687 = vmatpush1.msra.mxu0 0.0
    %688 = vmatprep.subr.mxu0 0.0
    %689 = vmatpush1.msra.mxu0 0.0
    %690 = vmatprep.subr.mxu0 0.0
    %691 = vmatpush1.msra.mxu0 0.0
    %692 = vmatprep.subr.mxu0 0.0
    %693 = vmatpush1.msra.mxu0 0.0
    %694 = vmatprep.subr.mxu0 0.0
    %695 = vmatpush1.msra.mxu0 0.0
    %696 = vmatprep.subr.mxu0 0.0
    %697 = vmatpush1.msra.mxu0 0.0
    %698 = vmatprep.subr.mxu0 0.0
    %699 = vmatpush1.msra.mxu0 0.0
    %700 = vmatprep.subr.mxu0 0.0
    %701 = vmatpush1.msra.mxu0 0.0
    %702 = vmatprep.subr.mxu0 0.0
    %703 = vmatpush1.msra.mxu0 0.0
    %704 = vmatprep.subr.mxu0 0.0
    %705 = vmatpush1.msra.mxu0 0.0
    %706 = vmatprep.subr.mxu0 0.0
    %707 = vmatpush1.msra.mxu0 0.0
    %708 = vmatprep.subr.mxu0 0.0
    %709 = vmatpush1.msra.mxu0 0.0
    %710 = vmatprep.subr.mxu0 0.0
    %711 = vmatpush1.msra.mxu0 0.0
    %712 = vmatprep.subr.mxu0 0.0
    %713 = vmatpush1.msra.mxu0 0.0
    %714 = vmatprep.subr.mxu0 0.0
    %715 = vmatpush1.msra.mxu0 0.0
    %716 = vmatprep.subr.mxu0 0.0
    %717 = vmatpush1.msra.mxu0 0.0
    %718 = vmatprep.subr.mxu0 0.0
    %719 = vmatpush1.msra.mxu0 0.0
    %720 = vmatprep.subr.mxu0 0.0
    %721 = vmatpush1.msra.mxu0 0.0
    %722 = vmatprep.subr.mxu0 0.0
    %723 = vmatpush1.msra.mxu0 0.0
    %724 = vmatprep.subr.mxu0 0.0
    %725 = vmatpush1.msra.mxu0 0.0
    %726 = vmatprep.subr.mxu0 0.0
    %727 = vmatpush1.msra.mxu0 0.0
    %728 = vmatprep.subr.mxu0 0.0
    %729 = vmatpush1.msra.mxu0 0.0
    %730 = vmatprep.mubr.f32.mxu0 0.0
    %731 = vmatmul.mubr.f32.gmra.mrb[0].mxu0 %v664
    %v732 = vpop.f32.mrb[0].mxu0
    %v733 = vadd.f32 0.0, %v732
    %v734 = vpop.f32.mrb[0].mxu0
    %735 = vdwg.mxu0
    %v737 = vrot.slane %v733, 6
    %v739 = vadd.f32 %v121, %v737
    %v740 = vxor.u32 %v739, 2147483648
    %v741 = vmul.f32 %v740, 1.442695
    %v742 = vpow.pop %v741
    %v743 = vadd.f32 %v742, 1.0
    %v744 = vrcp.pop %v743
    %v745 = vmul.f32 1.0, %v744
    %v746 = vtanh.pop %v739
    %v747 = vsel %vm132, %v746, %v745
    %v749 = vrot.slane %v654, 6
    %v751 = vmul.f32 %v747, %v749
    %753 = vrot.lane.b32.xlu0 %v747, 64
    %v754 = vpop.permute.xlu0 %753
    %v756 = vmul.f32 %v747, %v754
    %758 = vrot.lane.b32.xlu0 %v756, 32
    %v759 = vpop.permute.xlu0 %758
    %v761 = vadd.f32 %v751, %v759
    %v762 = vtanh.pop %v761
    %764 = vrot.lane.b32.xlu0 %v762, 64
    %v765 = vpop.permute.xlu0 %764
    %v767 = vmul.f32 %v747, %v765
    %v769 = vrot.slane %v767, 2
    %770 = vrot.lane.b32.xlu0 %v769, 32
    %v771 = vpop.permute.xlu0 %770
    %v772 = vsel %vm133, %v771, 0
    %774 = vmatprep.subr.mxu0 0.0
    %775 = vmatpush1.msra.mxu0 %v124
    %776 = vmatprep.subr.mxu0 0.0
    %777 = vmatpush1.msra.mxu0 %v125
    %778 = vmatprep.subr.mxu0 0.0
    %779 = vmatpush1.msra.mxu0 %v126
    %780 = vmatprep.subr.mxu0 0.0
    %781 = vmatpush1.msra.mxu0 %v127
    %782 = vmatprep.subr.mxu0 0.0
    %783 = vmatpush1.msra.mxu0 0.0
    %784 = vmatprep.subr.mxu0 0.0
    %785 = vmatpush1.msra.mxu0 0.0
    %786 = vmatprep.subr.mxu0 0.0
    %787 = vmatpush1.msra.mxu0 0.0
    %788 = vmatprep.subr.mxu0 0.0
    %789 = vmatpush1.msra.mxu0 0.0
    %790 = vmatprep.subr.mxu0 0.0
    %791 = vmatpush1.msra.mxu0 0.0
    %792 = vmatprep.subr.mxu0 0.0
    %793 = vmatpush1.msra.mxu0 0.0
    %794 = vmatprep.subr.mxu0 0.0
    %795 = vmatpush1.msra.mxu0 0.0
    %796 = vmatprep.subr.mxu0 0.0
    %797 = vmatpush1.msra.mxu0 0.0
    %798 = vmatprep.subr.mxu0 0.0
    %799 = vmatpush1.msra.mxu0 0.0
    %800 = vmatprep.subr.mxu0 0.0
    %801 = vmatpush1.msra.mxu0 0.0
    %802 = vmatprep.subr.mxu0 0.0
    %803 = vmatpush1.msra.mxu0 0.0
    %804 = vmatprep.subr.mxu0 0.0
    %805 = vmatpush1.msra.mxu0 0.0
    %806 = vmatprep.subr.mxu0 0.0
    %807 = vmatpush1.msra.mxu0 0.0
    %808 = vmatprep.subr.mxu0 0.0
    %809 = vmatpush1.msra.mxu0 0.0
    %810 = vmatprep.subr.mxu0 0.0
    %811 = vmatpush1.msra.mxu0 0.0
    %812 = vmatprep.subr.mxu0 0.0
    %813 = vmatpush1.msra.mxu0 0.0
    %814 = vmatprep.subr.mxu0 0.0
    %815 = vmatpush1.msra.mxu0 0.0
    %816 = vmatprep.subr.mxu0 0.0
    %817 = vmatpush1.msra.mxu0 0.0
    %818 = vmatprep.subr.mxu0 0.0
    %819 = vmatpush1.msra.mxu0 0.0
    %820 = vmatprep.subr.mxu0 0.0
    %821 = vmatpush1.msra.mxu0 0.0
    %822 = vmatprep.subr.mxu0 0.0
    %823 = vmatpush1.msra.mxu0 0.0
    %824 = vmatprep.subr.mxu0 0.0
    %825 = vmatpush1.msra.mxu0 0.0
    %826 = vmatprep.subr.mxu0 0.0
    %827 = vmatpush1.msra.mxu0 0.0
    %828 = vmatprep.subr.mxu0 0.0
    %829 = vmatpush1.msra.mxu0 0.0
    %830 = vmatprep.subr.mxu0 0.0
    %831 = vmatpush1.msra.mxu0 0.0
    %832 = vmatprep.subr.mxu0 0.0
    %833 = vmatpush1.msra.mxu0 0.0
    %834 = vmatprep.subr.mxu0 0.0
    %835 = vmatpush1.msra.mxu0 0.0
    %836 = vmatprep.subr.mxu0 0.0
    %837 = vmatpush1.msra.mxu0 0.0
    %838 = vmatprep.mubr.f32.mxu0 0.0
    %839 = vmatmul.mubr.f32.gmra.mrb[0].mxu0 %v772
    %v840 = vpop.f32.mrb[0].mxu0
    %v841 = vadd.f32 0.0, %v840
    %v842 = vpop.f32.mrb[0].mxu0
    %843 = vdwg.mxu0
    %v845 = vrot.slane %v841, 4
    %v847 = vadd.f32 %v121, %v845
    %v848 = vxor.u32 %v847, 2147483648
    %v849 = vmul.f32 %v848, 1.442695
    %v850 = vpow.pop %v849
    %v851 = vadd.f32 %v850, 1.0
    %v852 = vrcp.pop %v851
    %v853 = vmul.f32 1.0, %v852
    %v854 = vtanh.pop %v847
    %v855 = vsel %vm132, %v854, %v853
    %v857 = vrot.slane %v761, 6
    %v859 = vmul.f32 %v855, %v857
    %861 = vrot.lane.b32.xlu0 %v855, 64
    %v862 = vpop.permute.xlu0 %861
    %v864 = vmul.f32 %v855, %v862
    %866 = vrot.lane.b32.xlu0 %v864, 32
    %v867 = vpop.permute.xlu0 %866
    %v869 = vadd.f32 %v859, %v867
    %v870 = vtanh.pop %v869
    %872 = vrot.lane.b32.xlu0 %v870, 64
    %v873 = vpop.permute.xlu0 %872
    %v875 = vmul.f32 %v855, %v873
    %v877 = vrot.slane %v875, 4
    %878 = vrot.lane.b32.xlu0 %v877, 32
    %v879 = vpop.permute.xlu0 %878
    %v880 = vsel %vm133, %v879, 0
    %882 = vmatprep.subr.mxu0 0.0
    %883 = vmatpush1.msra.mxu0 %v124
    %884 = vmatprep.subr.mxu0 0.0
    %885 = vmatpush1.msra.mxu0 %v125
    %886 = vmatprep.subr.mxu0 0.0
    %887 = vmatpush1.msra.mxu0 %v126
    %888 = vmatprep.subr.mxu0 0.0
    %889 = vmatpush1.msra.mxu0 %v127
    %890 = vmatprep.subr.mxu0 0.0
    %891 = vmatpush1.msra.mxu0 0.0
    %892 = vmatprep.subr.mxu0 0.0
    %893 = vmatpush1.msra.mxu0 0.0
    %894 = vmatprep.subr.mxu0 0.0
    %895 = vmatpush1.msra.mxu0 0.0
    %896 = vmatprep.subr.mxu0 0.0
    %897 = vmatpush1.msra.mxu0 0.0
    %898 = vmatprep.subr.mxu0 0.0
    %899 = vmatpush1.msra.mxu0 0.0
    %900 = vmatprep.subr.mxu0 0.0
    %901 = vmatpush1.msra.mxu0 0.0
    %902 = vmatprep.subr.mxu0 0.0
    %903 = vmatpush1.msra.mxu0 0.0
    %904 = vmatprep.subr.mxu0 0.0
    %905 = vmatpush1.msra.mxu0 0.0
    %906 = vmatprep.subr.mxu0 0.0
    %907 = vmatpush1.msra.mxu0 0.0
    %908 = vmatprep.subr.mxu0 0.0
    %909 = vmatpush1.msra.mxu0 0.0
    %910 = vmatprep.subr.mxu0 0.0
    %911 = vmatpush1.msra.mxu0 0.0
    %912 = vmatprep.subr.mxu0 0.0
    %913 = vmatpush1.msra.mxu0 0.0
    %914 = vmatprep.subr.mxu0 0.0
    %915 = vmatpush1.msra.mxu0 0.0
    %916 = vmatprep.subr.mxu0 0.0
    %917 = vmatpush1.msra.mxu0 0.0
    %918 = vmatprep.subr.mxu0 0.0
    %919 = vmatpush1.msra.mxu0 0.0
    %920 = vmatprep.subr.mxu0 0.0
    %921 = vmatpush1.msra.mxu0 0.0
    %922 = vmatprep.subr.mxu0 0.0
    %923 = vmatpush1.msra.mxu0 0.0
    %924 = vmatprep.subr.mxu0 0.0
    %925 = vmatpush1.msra.mxu0 0.0
    %926 = vmatprep.subr.mxu0 0.0
    %927 = vmatpush1.msra.mxu0 0.0
    %928 = vmatprep.subr.mxu0 0.0
    %929 = vmatpush1.msra.mxu0 0.0
    %930 = vmatprep.subr.mxu0 0.0
    %931 = vmatpush1.msra.mxu0 0.0
    %932 = vmatprep.subr.mxu0 0.0
    %933 = vmatpush1.msra.mxu0 0.0
    %934 = vmatprep.subr.mxu0 0.0
    %935 = vmatpush1.msra.mxu0 0.0
    %936 = vmatprep.subr.mxu0 0.0
    %937 = vmatpush1.msra.mxu0 0.0
    %938 = vmatprep.subr.mxu0 0.0
    %939 = vmatpush1.msra.mxu0 0.0
    %940 = vmatprep.subr.mxu0 0.0
    %941 = vmatpush1.msra.mxu0 0.0
    %942 = vmatprep.subr.mxu0 0.0
    %943 = vmatpush1.msra.mxu0 0.0
    %944 = vmatprep.subr.mxu0 0.0
    %945 = vmatpush1.msra.mxu0 0.0
    %946 = vmatprep.mubr.f32.mxu0 0.0
    %947 = vmatmul.mubr.f32.gmra.mrb[0].mxu0 %v880
    %v948 = vpop.f32.mrb[0].mxu0
    %v949 = vadd.f32 0.0, %v948
    %v950 = vpop.f32.mrb[0].mxu0
    %951 = vdwg.mxu0
    %v953 = vrot.slane %v949, 2
    %v955 = vadd.f32 %v121, %v953
    %v956 = vxor.u32 %v955, 2147483648
    %v957 = vmul.f32 %v956, 1.442695
    %v958 = vpow.pop %v957
    %v959 = vadd.f32 %v958, 1.0
    %v960 = vrcp.pop %v959
    %v961 = vmul.f32 1.0, %v960
    %v962 = vtanh.pop %v955
    %v963 = vsel %vm132, %v962, %v961
    %v965 = vrot.slane %v869, 6
    %v967 = vmul.f32 %v963, %v965
    %969 = vrot.lane.b32.xlu0 %v963, 64
    %v970 = vpop.permute.xlu0 %969
    %v972 = vmul.f32 %v963, %v970
    %974 = vrot.lane.b32.xlu0 %v972, 32
    %v975 = vpop.permute.xlu0 %974
    %v977 = vadd.f32 %v967, %v975
    %v978 = vtanh.pop %v977
    %980 = vrot.lane.b32.xlu0 %v978, 64
    %v981 = vpop.permute.xlu0 %980
    %v983 = vmul.f32 %v963, %v981
    %v984 = vld [vmem:[%s4] sm:$0xff]
    %v985 = vld [vmem:[%s4 + $0x8] sm:$0xff]
    %v986 = vld [vmem:[%s4 + $0x10] sm:$0xff]
    %v987 = vld [vmem:[%s4 + $0x18] sm:$0xff]
    %v988 = vld [vmem:[%s5] sm:$0x1]
    %v990 = vlaneseq
    %v991 = vshrl.u32 %v990, 7
    %v992 = vsub.s32 0, %v991
    %v993 = vrot.slane %v988, %v992
    %v996 = vrot.slane %v983, 6
    %997 = vrot.lane.b32.xlu0 %v996, 32
    %v998 = vpop.permute.xlu0 %997
    %v999 = vsel %vm133, %v998, 0
    %1001 = vmatprep.subr.mxu0 0.0
    %1002 = vmatpush1.msra.mxu0 %v984
    %1003 = vmatprep.subr.mxu0 0.0
    %1004 = vmatpush1.msra.mxu0 %v985
    %1005 = vmatprep.subr.mxu0 0.0
    %1006 = vmatpush1.msra.mxu0 %v986
    %1007 = vmatprep.subr.mxu0 0.0
    %1008 = vmatpush1.msra.mxu0 %v987
    %1009 = vmatprep.subr.mxu0 0.0
    %1010 = vmatpush1.msra.mxu0 0.0
    %1011 = vmatprep.subr.mxu0 0.0
    %1012 = vmatpush1.msra.mxu0 0.0
    %1013 = vmatprep.subr.mxu0 0.0
    %1014 = vmatpush1.msra.mxu0 0.0
    %1015 = vmatprep.subr.mxu0 0.0
    %1016 = vmatpush1.msra.mxu0 0.0
    %1017 = vmatprep.subr.mxu0 0.0
    %1018 = vmatpush1.msra.mxu0 0.0
    %1019 = vmatprep.subr.mxu0 0.0
    %1020 = vmatpush1.msra.mxu0 0.0
    %1021 = vmatprep.subr.mxu0 0.0
    %1022 = vmatpush1.msra.mxu0 0.0
    %1023 = vmatprep.subr.mxu0 0.0
    %1024 = vmatpush1.msra.mxu0 0.0
    %1025 = vmatprep.subr.mxu0 0.0
    %1026 = vmatpush1.msra.mxu0 0.0
    %1027 = vmatprep.subr.mxu0 0.0
    %1028 = vmatpush1.msra.mxu0 0.0
    %1029 = vmatprep.subr.mxu0 0.0
    %1030 = vmatpush1.msra.mxu0 0.0
    %1031 = vmatprep.subr.mxu0 0.0
    %1032 = vmatpush1.msra.mxu0 0.0
    %1033 = vmatprep.subr.mxu0 0.0
    %1034 = vmatpush1.msra.mxu0 0.0
    %1035 = vmatprep.subr.mxu0 0.0
    %1036 = vmatpush1.msra.mxu0 0.0
    %1037 = vmatprep.subr.mxu0 0.0
    %1038 = vmatpush1.msra.mxu0 0.0
    %1039 = vmatprep.subr.mxu0 0.0
    %1040 = vmatpush1.msra.mxu0 0.0
    %1041 = vmatprep.subr.mxu0 0.0
    %1042 = vmatpush1.msra.mxu0 0.0
    %1043 = vmatprep.subr.mxu0 0.0
    %1044 = vmatpush1.msra.mxu0 0.0
    %1045 = vmatprep.subr.mxu0 0.0
    %1046 = vmatpush1.msra.mxu0 0.0
    %1047 = vmatprep.subr.mxu0 0.0
    %1048 = vmatpush1.msra.mxu0 0.0
    %1049 = vmatprep.subr.mxu0 0.0
    %1050 = vmatpush1.msra.mxu0 0.0
    %1051 = vmatprep.subr.mxu0 0.0
    %1052 = vmatpush1.msra.mxu0 0.0
    %1053 = vmatprep.subr.mxu0 0.0
    %1054 = vmatpush1.msra.mxu0 0.0
    %1055 = vmatprep.subr.mxu0 0.0
    %1056 = vmatpush1.msra.mxu0 0.0
    %1057 = vmatprep.subr.mxu0 0.0
    %1058 = vmatpush1.msra.mxu0 0.0
    %1059 = vmatprep.subr.mxu0 0.0
    %1060 = vmatpush1.msra.mxu0 0.0
    %1061 = vmatprep.subr.mxu0 0.0
    %1062 = vmatpush1.msra.mxu0 0.0
    %1063 = vmatprep.subr.mxu0 0.0
    %1064 = vmatpush1.msra.mxu0 0.0
    %1065 = vmatprep.mubr.f32.mxu0 0.0
    %1066 = vmatmul.mubr.f32.gmra.mrb[0].mxu0 %v999
    %v1067 = vpop.f32.mrb[0].mxu0
    %v1068 = vadd.f32 %v993, %v1067
    %v1069 = vpop.f32.mrb[0].mxu0
    %1070 = vdwg.mxu0
    %vm1071 = vcmask 1041408
    %v1072 = vsel %vm1071, %v1068, -inf
    %1073 = vmax.xlane.f32.xlu0 %v1072
    %v1074 = vpop.xlane.xlu0 %1073
    %v1075 = vsub.f32 %v1068, %v1074
    %v1076 = vmul.f32 %v1075, 1.442695
    %v1077 = vpow.pop %v1076
    %v1078 = vsel %vm1071, %v1077, 0.0
    %1079 = vadd.xlane.f32.xlu0 %v1078
    %v1080 = vpop.xlane.xlu0 %1079
    %v1081 = vrcp.pop %v1080
    %v1082 = vmul.f32 %v1077, %v1081
    %vm1083 = vcmask 9216
    %1084 = vst.msk [vmem:[#allocation2] sm:$0x3] %vm1083, %v1082
    %1085 = vrot.lane.b32.xlu0 %v983, 32
    %v1086 = vpop.permute.xlu0 %1085
    %vm1088 = vcmask 261126
    %1089 = vst.msk [vmem:[#allocation4 - $0x6] sm:$0xc0] %vm1088, %v1086
    %1091 = vrot.lane.b32.xlu0 %v977, 96
    %v1092 = vpop.permute.xlu0 %1091
    %1094 = vst.msk [vmem:[#allocation6 - $0x6] sm:$0xc0] %vm1088, %v1092
    // Predicated region
    $region26: #{my_lstm_forward.1} parent=1 // pred_check
      _
    $region27: #{my_lstm_forward.1} parent=1 // pred_check_branch
      %1096 = sbr.rel (0) target = $region29
    $region28: #{my_lstm_forward.1} parent=1 // pred_region
      %s1098 = ssub.s32 32, 32
      %1099 = vsyncadd [#allocation3], %s1098
      %s1101 = sshll.u32 [#allocation2], 4
      %s1102 = int_to_ptr.vmem [resolvable:$true] %s1101
      %1104 = dma.vmem_to_hbm [thread:$0]  %s1102, 32, %s6, [#allocation3]
    $region29: #{my_lstm_forward.1} parent=1 // pred_fallthru
      _
    // Predicated region
    $region30: #{my_lstm_forward.1} parent=1 // pred_check
      _
    $region31: #{my_lstm_forward.1} parent=1 // pred_check_branch
      %1106 = sbr.rel (0) target = $region33
    $region32: #{my_lstm_forward.1} parent=1 // pred_region
      %s1108 = ssub.s32 32, 32
      %1109 = vsyncadd [#allocation5], %s1108
      %s1111 = sshll.u32 [#allocation4], 4
      %s1112 = int_to_ptr.vmem [resolvable:$true] %s1111
      %1114 = dma.vmem_to_hbm [thread:$0]  %s1112, 32, %s7, [#allocation5]
    $region33: #{my_lstm_forward.1} parent=1 // pred_fallthru
      _
    // Predicated region
    $region34: #{my_lstm_forward.1} parent=1 // pred_check
      _
    $region35: #{my_lstm_forward.1} parent=1 // pred_check_branch
      %1116 = sbr.rel (0) target = $region37
    $region36: #{my_lstm_forward.1} parent=1 // pred_region
      %s1118 = ssub.s32 32, 32
      %1119 = vsyncadd [#allocation5], %s1118
      %s1121 = sshll.u32 [#allocation6], 4
      %s1122 = int_to_ptr.vmem [resolvable:$true] %s1121
      %1124 = dma.vmem_to_hbm [thread:$0]  %s1122, 32, %s8, [#allocation5]
    $region37: #{my_lstm_forward.1} parent=1 // pred_fallthru
      _
    // Predicated region
    $region38: #{my_lstm_forward.1} parent=1 // pred_check
      _
    $region39: #{my_lstm_forward.1} parent=1 // pred_check_branch
      %1126 = sbr.rel (0) target = $region41
    $region40: #{my_lstm_forward.1} parent=1 // pred_region
      %1127 = dma.done [#allocation3], 32
    $region41: #{my_lstm_forward.1} parent=1 // pred_fallthru
      _
    // Predicated region
    $region42: #{my_lstm_forward.1} parent=1 // pred_check
      _
    $region43: #{my_lstm_forward.1} parent=1 // pred_check_branch
      %1129 = sbr.rel (0) target = $region45
    $region44: #{my_lstm_forward.1} parent=1 // pred_region
      %1130 = dma.done [#allocation5], 32
    $region45: #{my_lstm_forward.1} parent=1 // pred_fallthru
      _
    // Predicated region
    $region46: #{my_lstm_forward.1} parent=1 // pred_check
      _
    $region47: #{my_lstm_forward.1} parent=1 // pred_check_branch
      %1132 = sbr.rel (0) target = $region49
    $region48: #{my_lstm_forward.1} parent=1 // pred_region
      %1133 = dma.done [#allocation5], 32
    $region49: #{my_lstm_forward.1} parent=1 // pred_fallthru
      _
    %1134 = vsyncpa [#allocation3], 1
    %1135 = vsyncpa [#allocation5], 1

</llo_original>
